<compile_context>
chip_gen: v5e
topology: v5e:2x2
jax: 0.10.0
libtpu: 0.0.40
codegen_flags: <defaults>
</compile_context>

<pallas_src>
import functools

import jax
import jax.numpy as jnp
from jax import lax
from jax.experimental import pallas as pl
from jax.experimental.pallas import tpu as pltpu

_F32 = 4


# ------------------------------ VMEM budgeting ------------------------------

def _tpu_vmem_bytes():
    try:
        return int(pltpu.get_tpu_info().vmem_capacity_bytes)
    except Exception:
        return 64 * 1024 * 1024            # assume v7x (smallest per-TC VMEM)


def _tile_budget():
    # ~75% of physical VMEM for the (double-buffered) working set:
    # 48 MiB on v7x (64 MiB), 96 MiB on v5e/v6e (128 MiB).
    return int(_tpu_vmem_bytes() * 0.75)


def _vmem_limit(footprint_bytes):
    """Scoped-VMEM limit: footprint with headroom, raised above the small scoped
    defaults but never above ~90% of physical VMEM."""
    phys = _tpu_vmem_bytes()
    limit = max(32 * 1024 * 1024, 2 * int(footprint_bytes))
    return int(min(limit, int(phys * 0.9)))


# ---------------------------- footprint models ------------------------------
# Count double-buffered DMA tiles AND in-kernel f32 temporaries (upcast, x*x).

def _fused_footprint(n, ct, itemsize):
    io = 2 * n * ct * itemsize * 2          # x in + y out, each double-buffered
    tmp = 2 * n * ct * _F32                 # in-kernel f32 working copies (x32, x*x)
    rows = 16 * ct * _F32                   # w/b/mean/var + derived scale/offset rows
    return io + tmp + rows


def _stats_footprint(nt, ct, itemsize):
    io = 2 * nt * ct * itemsize             # x in, double-buffered
    tmp = 2 * nt * ct * _F32                # f32 upcast + x*x
    rows = 12 * ct * _F32                   # mean/var out + sum/sumsq scratch
    return io + tmp + rows


def _norm_footprint(nt, ct, itemsize):
    io = 2 * nt * ct * itemsize * 2         # x in + y out, double-buffered
    tmp = nt * ct * _F32                    # f32 upcast stream
    rows = (2 * 4 + 2) * ct * _F32 * 2      # w/b/mean/var rows + scale/offset scratch
    return io + tmp + rows


# ------------------------------ tile selection -------------------------------

def _feature_tile_candidates(c):
    """Lane-dense feature tiles: multiples of 128 dividing C (descending); fall
    back to the full (lane-padded) row when C has no such divisor."""
    cands = [ct for ct in range(128, c + 1, 128) if c % ct == 0]
    cands.sort(reverse=True)
    if not cands:
        cands = [c]
    return cands


def _order_feature_tiles(c):
    cands = _feature_tile_candidates(c)
    # v7x has 2 TensorCores: prefer >= 2 feature tiles on the "parallel" axis as
    # long as each tile stays >= 512 lanes; harmless on single-TC v5e/v6e.
    if len(cands) > 1 and cands[0] == c and cands[1] >= 512:
        cands = cands[1:] + cands[:1]       # try the split first; full-C last resort
    return cands


def _pick_fused_feature_tile(c, n, itemsize, budget):
    """Feature tile for the fused (whole-batch-resident) kernel, or None if even
    the narrowest lane-dense tile cannot hold the full batch in VMEM."""
    for ct in _order_feature_tiles(c):
        if _fused_footprint(n, ct, itemsize) <= budget:
            return ct
    return None


def _pick_feature_tile_batched(c, n, itemsize, budget, footprint_fn):
    nt_min = min(n, 8)
    cands = _order_feature_tiles(c)
    for ct in cands:
        if footprint_fn(nt_min, ct, itemsize) <= budget:
            return ct
    return cands[-1]


def _pick_batch_tile(n, ct, itemsize, budget, footprint_fn):
    cands = [nt for nt in range(8, n + 1, 8) if n % nt == 0]
    cands.sort(reverse=True)
    if n not in cands:
        cands.insert(0, n)                  # full batch is always a legal block
    for nt in cands:
        if footprint_fn(nt, ct, itemsize) <= budget:
            return nt
    # TODO(synk): awkward N with no small multiple-of-8 divisor could still
    # overflow here; would need a padded/BoundedSlice batch tile.
    return cands[-1]


# ----------------------------- Pallas kernels -------------------------------

def _fused_stats_norm_kernel(inverse, affine_from_stats,
                             x_ref, w_ref, b_ref, y_ref, mean_ref, var_ref):
    """One pass over the resident (N, C_TILE) tile: batch mean/var + normalize."""
    x = x_ref[...].astype(jnp.float32)                        # (N, CT)
    n = x.shape[0]
    # Single traversal: sum and sum-of-squares (shifted-variance formula).
    s = jnp.sum(x, axis=0, keepdims=True)                     # (1, CT)
    sq = jnp.sum(x * x, axis=0, keepdims=True)                # (1, CT)
    mean = s * (1.0 / n)
    # torch.var default is unbiased (ddof=1); n == 1 is undefined, as in torch.
    var = jnp.maximum((sq - n * mean * mean) * (1.0 / (n - 1)), 0.0)
    mean_ref[...] = mean
    var_ref[...] = var

    if affine_from_stats:
        # init call: weights = sqrt(var), bias = mean (derived in-kernel so the
        # whole init forward is a single pass over x).
        w = jnp.sqrt(var)
        b = mean
    else:
        w = w_ref[...].astype(jnp.float32)                     # (1, CT)
        b = b_ref[...].astype(jnp.float32)                     # (1, CT)

    # Fold everything into a per-feature scale/offset row so the N x CT hot path
    # is a single multiply-add (divide/sqrt stay on the (1, CT) row -> EUP).
    if inverse:
        # y = ((x - b) / w) * sqrt(var) + mean
        scale = jnp.sqrt(var) / w
        offset = mean - b * scale
    else:
        # y = w * (x - mean) * rsqrt(var) + b
        scale = w * lax.rsqrt(var)
        offset = b - mean * scale

    y_ref[...] = (x * scale + offset).astype(y_ref.dtype)


def _stats_kernel(n_total, x_ref, mean_ref, var_ref, sum_sc, sumsq_sc):
    """Batch-tiled stats reduction (large-N fallback): grid=(C/ct, N/nt)."""
    j = pl.program_id(1)

    @pl.when(j == 0)
    def _():
        sum_sc[...] = jnp.zeros_like(sum_sc)
        sumsq_sc[...] = jnp.zeros_like(sumsq_sc)

    x = x_ref[...].astype(jnp.float32)                         # (NT, CT)
    sum_sc[...] += jnp.sum(x, axis=0, keepdims=True)
    sumsq_sc[...] += jnp.sum(x * x, axis=0, keepdims=True)

    @pl.when(j == pl.num_programs(1) - 1)
    def _():
        mean = sum_sc[...] * (1.0 / n_total)
        var = jnp.maximum(
            (sumsq_sc[...] - n_total * mean * mean) * (1.0 / (n_total - 1)), 0.0)
        mean_ref[...] = mean
        var_ref[...] = var


def _normalize_kernel(inverse, x_ref, w_ref, b_ref, mean_ref, var_ref, y_ref,
                      scale_sc, offset_sc):
    """Normalize with given stats; per-feature scale/offset hoisted to scratch."""
    @pl.when(pl.program_id(1) == 0)
    def _():
        w = w_ref[...].astype(jnp.float32)
        b = b_ref[...].astype(jnp.float32)
        mean = mean_ref[...].astype(jnp.float32)
        var = var_ref[...].astype(jnp.float32)
        if inverse:
            scale = jnp.sqrt(var) / w
            offset = mean - b * scale
        else:
            scale = w * lax.rsqrt(var)
            offset = b - mean * scale
        scale_sc[...] = scale
        offset_sc[...] = offset

    x = x_ref[...].astype(jnp.float32)                         # (NT, CT)
    y_ref[...] = (x * scale_sc[...] + offset_sc[...]).astype(y_ref.dtype)


# ------------------------------ pallas_call glue ----------------------------

def _fused_stats_normalize(x, w, b, inverse, affine_from_stats, ct):
    n, c = x.shape
    kern = functools.partial(_fused_stats_norm_kernel,
                             bool(inverse), bool(affine_from_stats))
    mat = pl.BlockSpec((n, ct), lambda i: (0, i))
    row = pl.BlockSpec((1, ct), lambda i: (0, i))
    vmem = _vmem_limit(_fused_footprint(n, ct, x.dtype.itemsize))
    return pl.pallas_call(
        kern,
        grid=(c // ct,),
        in_specs=[mat, row, row],
        out_specs=(mat, row, row),
        out_shape=(jax.ShapeDtypeStruct((n, c), x.dtype),
                   jax.ShapeDtypeStruct((1, c), jnp.float32),
                   jax.ShapeDtypeStruct((1, c), jnp.float32)),
        compiler_params=pltpu.CompilerParams(
            dimension_semantics=("parallel",),
            vmem_limit_bytes=vmem),
    )(x, w, b)


def _batch_stats(x, ct, nt):
    n, c = x.shape
    kern = functools.partial(_stats_kernel, float(n))
    vmem = _vmem_limit(_stats_footprint(nt, ct, x.dtype.itemsize))
    return pl.pallas_call(
        kern,
        grid=(c // ct, n // nt),                               # features outer
        in_specs=[pl.BlockSpec((nt, ct), lambda i, j: (j, i))],
        out_specs=(pl.BlockSpec((1, ct), lambda i, j: (0, i)),
                   pl.BlockSpec((1, ct), lambda i, j: (0, i))),
        out_shape=(jax.ShapeDtypeStruct((1, c), jnp.float32),
                   jax.ShapeDtypeStruct((1, c), jnp.float32)),
        scratch_shapes=[pltpu.VMEM((1, ct), jnp.float32),
                        pltpu.VMEM((1, ct), jnp.float32)],
        compiler_params=pltpu.CompilerParams(
            dimension_semantics=("parallel", "arbitrary"),
            vmem_limit_bytes=vmem),
    )(x)


def _normalize(x, w, b, mean, var, inverse):
    n, c = x.shape
    budget = _tile_budget()
    ct = _pick_feature_tile_batched(c, n, x.dtype.itemsize, budget, _norm_footprint)
    nt = _pick_batch_tile(n, ct, x.dtype.itemsize, budget, _norm_footprint)
    kern = functools.partial(_normalize_kernel, bool(inverse))
    # Features outer / batch inner: param rows keep the same block index across
    # consecutive steps (no redundant row DMAs) and scale/offset are computed once
    # per feature tile under pl.when(batch_step == 0).
    mat = pl.BlockSpec((nt, ct), lambda i, j: (j, i))
    row = pl.BlockSpec((1, ct), lambda i, j: (0, i))
    vmem = _vmem_limit(_norm_footprint(nt, ct, x.dtype.itemsize))
    return pl.pallas_call(
        kern,
        grid=(c // ct, n // nt),
        in_specs=[mat, row, row, row, row],
        out_specs=mat,
        out_shape=jax.ShapeDtypeStruct((n, c), x.dtype),
        scratch_shapes=[pltpu.VMEM((1, ct), jnp.float32),
                        pltpu.VMEM((1, ct), jnp.float32)],
        compiler_params=pltpu.CompilerParams(
            dimension_semantics=("parallel", "arbitrary"),
            vmem_limit_bytes=vmem),
    )(x, w, b, mean, var)


def _training_stats_normalize(x, w, b, inverse, affine_from_stats):
    """Batch stats + normalize. Fused single pass over x when the whole batch fits
    VMEM per feature tile; otherwise a v7x-safe two-pass batch-tiled scheme."""
    n, c = x.shape
    budget = _tile_budget()
    ct = _pick_fused_feature_tile(c, n, x.dtype.itemsize, budget)
    if ct is not None:
        return _fused_stats_normalize(x, w, b, inverse, affine_from_stats, ct)
    # Large-N fallback: batch-tiled reduction, then normalize (one extra x read).
    ct2 = _pick_feature_tile_batched(c, n, x.dtype.itemsize, budget, _stats_footprint)
    nt = _pick_batch_tile(n, ct2, x.dtype.itemsize, budget, _stats_footprint)
    mean, var = _batch_stats(x, ct2, nt)
    if affine_from_stats:
        w = jnp.sqrt(var)
        b = mean
    y = _normalize(x, w, b, mean, var, inverse)
    return y, mean, var


# ----------------------------- Module equivalent ----------------------------

class BatchNormStats1d:
    """JAX/Pallas port of the PyTorch BatchNormStats1d module (forward only)."""

    def __init__(self, num_features, eps=1e-5, decay=0.1):
        self.eps = eps            # eps is unused in the reference forward too
        self.decay = decay
        self.running_mean = jnp.zeros((1, num_features), jnp.float32)
        self.running_var = jnp.ones((1, num_features), jnp.float32)
        self.weights = jnp.ones((1, num_features), jnp.float32)
        self.bias = jnp.zeros((1, num_features), jnp.float32)
        self.init = True

    def forward(self, x, training, inverse):
        n, c = x.shape
        if self.init:
            # Single fused pass over x: batch stats + normalization with the
            # stats-derived affine (weights = sqrt(var), bias = mean). On the init
            # call used_mean/var == init stats whether or not we are training, and
            # the decay update r - decay*(r - r) is a no-op, so no second stats
            # pass is needed (reference computes them twice).
            y, used_mean, used_var = _training_stats_normalize(
                x, self.weights, self.bias, inverse, affine_from_stats=True)
            self.weights = jnp.sqrt(used_var)
            self.bias = used_mean
            self.running_mean = used_mean
            self.running_var = used_var
            self.init = False
        elif training:
            y, used_mean, used_var = _training_stats_normalize(
                x, self.weights, self.bias, inverse, affine_from_stats=False)
            self.running_mean = (self.running_mean
                                 - self.decay * (self.running_mean - used_mean))
            self.running_var = (self.running_var
                                - self.decay * (self.running_var - used_var))
        else:
            used_mean, used_var = self.running_mean, self.running_var
            y = _normalize(x, self.weights, self.bias, used_mean, used_var, inverse)

        # expand_as(x) of the reference is a zero-copy view in torch; here the
        # broadcast stays outside the kernels (no (N, C) stat writes to HBM).
        used_var_e = jnp.broadcast_to(used_var, (n, c))
        used_weights_e = jnp.broadcast_to(self.weights, (n, c))
        return y, used_var_e, used_weights_e


# ---------------------------------- main ------------------------------------

if __name__ == "__main__":
    key = jax.random.PRNGKey(0)
    N, C = 8, 256
    x = jax.random.normal(key, (N, C), dtype=jnp.float32) * 2.0 + 0.5

    bn = BatchNormStats1d(num_features=C)

    # Call 1: init + training forward (non-inverse). With weights=sqrt(var) and
    # bias=mean, the output must equal x (up to rounding).
    y, used_var, used_w = bn.forward(x, training=True, inverse=False)
    jax.block_until_ready((y, used_var, used_w))
    assert y.shape == (N, C) and used_var.shape == (N, C) and used_w.shape == (N, C)
    assert jnp.allclose(y, x, atol=1e-4), "init training forward should be identity"

    # Batch statistics vs plain JAX.
    ref_var = jnp.var(x, axis=0, ddof=1)
    assert jnp.allclose(used_var[0], ref_var, rtol=1e-5, atol=1e-5)
    assert jnp.allclose(used_w[0], jnp.sqrt(ref_var), rtol=1e-5, atol=1e-5)

    # Call 2: non-init training forward on new data.
    x2 = jax.random.normal(jax.random.PRNGKey(1), (N, C), dtype=jnp.float32)
    y2, _, _ = bn.forward(x2, training=True, inverse=False)
    jax.block_until_ready(y2)
    m2 = jnp.mean(x2, axis=0, keepdims=True)
    v2 = jnp.var(x2, axis=0, ddof=1).reshape(1, C)
    ref_y2 = bn.weights * (x2 - m2) / jnp.sqrt(v2) + bn.bias
    assert jnp.allclose(y2, ref_y2, rtol=1e-4, atol=1e-4)

    # Call 3: eval inverse path using (updated) running stats.
    y3, uv3, uw3 = bn.forward(x, training=False, inverse=True)
    jax.block_until_ready((y3, uv3, uw3))
    rm, rv = bn.running_mean, bn.running_var
    ref_y3 = ((x - bn.bias) / bn.weights) * jnp.sqrt(rv) + rm
    assert jnp.allclose(y3, ref_y3, rtol=1e-4, atol=1e-4)

    # Also exercise the batch-tiled (large-N fallback) stats kernel at small shape.
    xb = jax.random.normal(jax.random.PRNGKey(2), (32, C), dtype=jnp.float32)
    mb, vb = _batch_stats(xb, ct=128, nt=8)
    jax.block_until_ready((mb, vb))
    assert jnp.allclose(mb[0], jnp.mean(xb, axis=0), rtol=1e-5, atol=1e-5)
    assert jnp.allclose(vb[0], jnp.var(xb, axis=0, ddof=1), rtol=1e-4, atol=1e-5)

    print("KERNEL_OK")
</pallas_src>

<mosaic_0001>
module attributes {stable_mosaic.version = 11 : i64} {
  func.func @_fused_stats_norm_kernel(%arg0: i32, %arg1: memref<8x256xf32, #tpu.memory_space<vmem>>, %arg2: memref<1x256xf32, #tpu.memory_space<vmem>>, %arg3: memref<1x256xf32, #tpu.memory_space<vmem>>, %arg4: memref<8x256xf32, #tpu.memory_space<vmem>>, %arg5: memref<1x256xf32, #tpu.memory_space<vmem>>, %arg6: memref<1x256xf32, #tpu.memory_space<vmem>>) attributes {dimension_semantics = [#tpu.dimension_semantics<parallel>], iteration_bounds = array<i64: 1>, scalar_prefetch = 0 : i64, scratch_operands = 0 : i64, tpu.core_type = #tpu.core_type<tc>, window_params = [{transform_indices = @transform_0, window_bounds = array<i64: 8, 256>}, {transform_indices = @transform_1, window_bounds = array<i64: 1, 256>}, {transform_indices = @transform_2, window_bounds = array<i64: 1, 256>}, {transform_indices = @transform_3, window_bounds = array<i64: 8, 256>}, {transform_indices = @transform_4, window_bounds = array<i64: 1, 256>}, {transform_indices = @transform_5, window_bounds = array<i64: 1, 256>}]} {
    %c0 = arith.constant 0 : index
    %c0_0 = arith.constant 0 : index
    %0 = vector.load %arg1[%c0, %c0_0] : memref<8x256xf32, #tpu.memory_space<vmem>>, vector<8x256xf32>
    %cst = arith.constant dense<0.000000e+00> : vector<256xf32>
    %1 = vector.multi_reduction <add>, %0, %cst [0] : vector<8x256xf32> to vector<256xf32>
    %2 = vector.shape_cast %1 : vector<256xf32> to vector<1x256xf32>
    %3 = arith.mulf %0, %0 : vector<8x256xf32>
    %cst_1 = arith.constant dense<0.000000e+00> : vector<256xf32>
    %4 = vector.multi_reduction <add>, %3, %cst_1 [0] : vector<8x256xf32> to vector<256xf32>
    %5 = vector.shape_cast %4 : vector<256xf32> to vector<1x256xf32>
    %cst_2 = arith.constant 1.250000e-01 : f32
    %6 = vector.broadcast %cst_2 : f32 to vector<1x256xf32>
    %7 = arith.mulf %2, %6 : vector<1x256xf32>
    %cst_3 = arith.constant 8.000000e+00 : f32
    %8 = vector.broadcast %cst_3 : f32 to vector<1x256xf32>
    %9 = arith.mulf %8, %7 : vector<1x256xf32>
    %10 = arith.mulf %9, %7 : vector<1x256xf32>
    %11 = arith.subf %5, %10 : vector<1x256xf32>
    %cst_4 = arith.constant 0.142857149 : f32
    %12 = vector.broadcast %cst_4 : f32 to vector<1x256xf32>
    %13 = arith.mulf %11, %12 : vector<1x256xf32>
    %cst_5 = arith.constant 0.000000e+00 : f32
    %14 = vector.broadcast %cst_5 : f32 to vector<1x256xf32>
    %15 = arith.maximumf %13, %14 : vector<1x256xf32>
    %c0_6 = arith.constant 0 : index
    %c0_7 = arith.constant 0 : index
    %16 = vector.load %arg5[%c0_6, %c0_7] : memref<1x256xf32, #tpu.memory_space<vmem>>, vector<1x256xf32>
    tpu.vector_store %arg5[%c0_6, %c0_7], %7 {strides = array<i32>} : memref<1x256xf32, #tpu.memory_space<vmem>>, vector<1x256xf32>,
    %c0_8 = arith.constant 0 : index
    %c0_9 = arith.constant 0 : index
    %17 = vector.load %arg6[%c0_8, %c0_9] : memref<1x256xf32, #tpu.memory_space<vmem>>, vector<1x256xf32>
    tpu.vector_store %arg6[%c0_8, %c0_9], %15 {strides = array<i32>} : memref<1x256xf32, #tpu.memory_space<vmem>>, vector<1x256xf32>,
    %18 = math.sqrt %15 : vector<1x256xf32>
    %19 = math.rsqrt %15 : vector<1x256xf32>
    %20 = arith.mulf %18, %19 : vector<1x256xf32>
    %21 = arith.mulf %7, %20 : vector<1x256xf32>
    %22 = arith.subf %7, %21 : vector<1x256xf32>
    %23 = vector.broadcast %20 : vector<1x256xf32> to vector<8x256xf32>
    %24 = arith.mulf %0, %23 : vector<8x256xf32>
    %25 = vector.broadcast %22 : vector<1x256xf32> to vector<8x256xf32>
    %26 = arith.addf %24, %25 : vector<8x256xf32>
    %c0_10 = arith.constant 0 : index
    %c0_11 = arith.constant 0 : index
    %27 = vector.load %arg4[%c0_10, %c0_11] : memref<8x256xf32, #tpu.memory_space<vmem>>, vector<8x256xf32>
    tpu.vector_store %arg4[%c0_10, %c0_11], %26 {strides = array<i32>} : memref<8x256xf32, #tpu.memory_space<vmem>>, vector<8x256xf32>,
    return
  }
  func.func @transform_0(%arg0: i32) -> (i32, i32) {
    %c0_i32 = arith.constant 0 : i32
    %c0_i32_0 = arith.constant 0 : i32
    return %c0_i32, %arg0 : i32, i32
  }
  func.func @transform_1(%arg0: i32) -> (i32, i32) {
    %c0_i32 = arith.constant 0 : i32
    %c0_i32_0 = arith.constant 0 : i32
    return %c0_i32, %arg0 : i32, i32
  }
  func.func @transform_2(%arg0: i32) -> (i32, i32) {
    %c0_i32 = arith.constant 0 : i32
    %c0_i32_0 = arith.constant 0 : i32
    return %c0_i32, %arg0 : i32, i32
  }
  func.func @transform_3(%arg0: i32) -> (i32, i32) {
    %c0_i32 = arith.constant 0 : i32
    %c0_i32_0 = arith.constant 0 : i32
    return %c0_i32, %arg0 : i32, i32
  }
  func.func @transform_4(%arg0: i32) -> (i32, i32) {
    %c0_i32 = arith.constant 0 : i32
    %c0_i32_0 = arith.constant 0 : i32
    return %c0_i32, %arg0 : i32, i32
  }
  func.func @transform_5(%arg0: i32) -> (i32, i32) {
    %c0_i32 = arith.constant 0 : i32
    %c0_i32_0 = arith.constant 0 : i32
    return %c0_i32, %arg0 : i32, i32
  }
}

</mosaic_0001>

<llo_original>
// kernel: tpu_custom_call.1
$region0: #{tpu_custom_call.1}
  #allocation0 [shape = 'u32[]', space=smem, size = 0x4, offset = 0x4, fixed_abs, tag = 'smem constant byte address 0x4 - core index']
  #allocation1 [shape = 'u32[72,128]{1,0:T(1,128)}', space=vmem, size = 0x9000, scoped, tag = 'internal scratch']
  %s0 = inlined_call_operand.hbm [shape: f32[8,256], index: 0, kind: input, shape index: {}]
  %s1 = inlined_call_operand.hbm [shape: f32[1,256], index: 1, kind: input, shape index: {}]
  %s2 = inlined_call_operand.hbm [shape: f32[1,256], index: 2, kind: input, shape index: {}]
  %s3 = inlined_call_operand.hbm [shape: f32[8,256], index: 3, kind: output, shape index: {0}]
  %s4 = inlined_call_operand.hbm [shape: f32[1,256], index: 4, kind: output, shape index: {1}]
  %s5 = inlined_call_operand.hbm [shape: f32[1,256], index: 5, kind: output, shape index: {2}]
  %6 = xla_tuple %s3, %s4, %s5
  %s7 = sld [smem:[#allocation0]]
  $region50: #{tpu_custom_call.1} parent=0
    _
  %s9 = ssub.s32 1, %s7
  %s10 = scalar_select 0, %s9, %s7
  $region1: #{tpu_custom_call.1} parent=0
    #allocation2 [shape = 'u8[8192]{0}', space=vmem, size = 0x2000, scoped, tag = 'input window, operand 0, single buffered']
    #allocation3 [shape = 's32[1]{0}', space=sflag, size = 0x4, scoped, tag = 'scoped memory for tpu_custom_call.1']
    #allocation4 [shape = 's32[1]{0}', space=sflag, size = 0x4, scoped, tag = 'scoped memory for tpu_custom_call.1']
    #allocation5 [shape = 'u8[1024]{0}', space=vmem, size = 0x400, scoped, tag = 'input window, operand 1, single buffered']
    #allocation6 [shape = 's32[1]{0}', space=sflag, size = 0x4, scoped, tag = 'scoped memory for tpu_custom_call.1']
    #allocation7 [shape = 'u8[1024]{0}', space=vmem, size = 0x400, scoped, tag = 'input window, operand 2, single buffered']
    #allocation8 [shape = 'u8[8192]{0}', space=vmem, size = 0x2000, scoped, tag = 'output window, operand 0, single buffered']
    #allocation9 [shape = 'u8[1024]{0}', space=vmem, size = 0x400, scoped, tag = 'output window, operand 1, single buffered']
    #allocation10 [shape = 's32[1]{0}', space=sflag, size = 0x4, scoped, tag = 'scoped memory for tpu_custom_call.1']
    #allocation11 [shape = 'u8[1024]{0}', space=vmem, size = 0x400, scoped, tag = 'output window, operand 2, single buffered']
    %11 = vsyncpa [#allocation3], 0
    %12 = vsyncpa [#allocation6], 0
    %13 = vsyncpa [#allocation4], 0
    %14 = vsyncpa [#allocation10], 0
    // Predicated region
    $region2: #{tpu_custom_call.1} parent=1 // pred_check
      _
    $region3: #{tpu_custom_call.1} parent=1 // pred_check_branch
      %16 = sbr.rel (0) target = $region5
    $region4: #{tpu_custom_call.1} parent=1 // pred_region
      %18 = vsyncadd [#allocation3], 0
      %s20 = sshll.u32 %s0, 4
      %s21 = int_to_ptr.hbm [resolvable:$true] %s20
      %s22 = sshll.u32 [#allocation2], 4
      %s23 = int_to_ptr.vmem [resolvable:$true] %s22
      %25 = dma.hbm_to_vmem [thread:$0]  %s21, 256, %s23, [#allocation3]
    $region5: #{tpu_custom_call.1} parent=1 // pred_fallthru
      _
    // Predicated region
    $region6: #{tpu_custom_call.1} parent=1 // pred_check
      _
    $region7: #{tpu_custom_call.1} parent=1 // pred_check_branch
      %27 = sbr.rel (0) target = $region9
    $region8: #{tpu_custom_call.1} parent=1 // pred_region
      %29 = vsyncadd [#allocation6], 0
      %s31 = sshll.u32 %s1, 4
      %s32 = int_to_ptr.hbm [resolvable:$true] %s31
      %s33 = sshll.u32 [#allocation5], 4
      %s34 = int_to_ptr.vmem [resolvable:$true] %s33
      %36 = dma.hbm_to_vmem [thread:$0]  %s32, 32, %s34, [#allocation6]
    $region9: #{tpu_custom_call.1} parent=1 // pred_fallthru
      _
    // Predicated region
    $region10: #{tpu_custom_call.1} parent=1 // pred_check
      _
    $region11: #{tpu_custom_call.1} parent=1 // pred_check_branch
      %38 = sbr.rel (0) target = $region13
    $region12: #{tpu_custom_call.1} parent=1 // pred_region
      %40 = vsyncadd [#allocation6], 0
      %s42 = sshll.u32 %s2, 4
      %s43 = int_to_ptr.hbm [resolvable:$true] %s42
      %s44 = sshll.u32 [#allocation7], 4
      %s45 = int_to_ptr.vmem [resolvable:$true] %s44
      %47 = dma.hbm_to_vmem [thread:$0]  %s43, 32, %s45, [#allocation6]
    $region13: #{tpu_custom_call.1} parent=1 // pred_fallthru
      _
    // Predicated region
    $region14: #{tpu_custom_call.1} parent=1 // pred_check
      _
    $region15: #{tpu_custom_call.1} parent=1 // pred_check_branch
      %49 = sbr.rel (0) target = $region17
    $region16: #{tpu_custom_call.1} parent=1 // pred_region
      %51 = dma.done [#allocation3], 256
    $region17: #{tpu_custom_call.1} parent=1 // pred_fallthru
      _
    // Predicated region
    $region18: #{tpu_custom_call.1} parent=1 // pred_check
      _
    $region19: #{tpu_custom_call.1} parent=1 // pred_check_branch
      %53 = sbr.rel (0) target = $region21
    $region20: #{tpu_custom_call.1} parent=1 // pred_region
      %55 = dma.done [#allocation6], 32
    $region21: #{tpu_custom_call.1} parent=1 // pred_fallthru
      _
    // Predicated region
    $region22: #{tpu_custom_call.1} parent=1 // pred_check
      _
    $region23: #{tpu_custom_call.1} parent=1 // pred_check_branch
      %57 = sbr.rel (0) target = $region25
    $region24: #{tpu_custom_call.1} parent=1 // pred_region
      %59 = dma.done [#allocation6], 32
    $region25: #{tpu_custom_call.1} parent=1 // pred_fallthru
      _
    %v60 = vld [vmem:[#allocation2] sm:$0xff]
    %v61 = vld [vmem:[#allocation2 + $0x8] sm:$0xff]
    %v62 = vrot.slane %v60, 4
    %v63 = vadd.f32 %v60, %v62
    %v64 = vrot.slane %v63, 2
    %v65 = vadd.f32 %v63, %v64
    %v66 = vrot.slane %v65, 1
    %v67 = vadd.f32 %v65, %v66
    %v68 = vrot.slane %v61, 4
    %v69 = vadd.f32 %v61, %v68
    %v70 = vrot.slane %v69, 2
    %v71 = vadd.f32 %v69, %v70
    %v72 = vrot.slane %v71, 1
    %v73 = vadd.f32 %v71, %v72
    %v74 = vmul.f32 %v60, %v60
    %v75 = vmul.f32 %v61, %v61
    %v76 = vrot.slane %v74, 4
    %v77 = vadd.f32 %v74, %v76
    %v78 = vrot.slane %v77, 2
    %v79 = vadd.f32 %v77, %v78
    %v80 = vrot.slane %v79, 1
    %v81 = vadd.f32 %v79, %v80
    %v82 = vrot.slane %v75, 4
    %v83 = vadd.f32 %v75, %v82
    %v84 = vrot.slane %v83, 2
    %v85 = vadd.f32 %v83, %v84
    %v86 = vrot.slane %v85, 1
    %v87 = vadd.f32 %v85, %v86
    %v88 = vmul.f32 %v67, 0.125
    %v89 = vmul.f32 %v73, 0.125
    %v90 = vmul.f32 %v88, 8.0
    %v91 = vmul.f32 %v89, 8.0
    %v92 = vmul.f32 %v90, %v88
    %v93 = vmul.f32 %v91, %v89
    %v94 = vsub.f32 %v81, %v92
    %v95 = vsub.f32 %v87, %v93
    %v96 = vmul.f32 %v94, 0.14285715
    %v97 = vmul.f32 %v95, 0.14285715
    %v98 = vmax.f32 %v96, 0.0
    %v99 = vmax.f32 %v97, 0.0
    %v102 = vrot.slane %v89, 7
    %vm103 = vcmask 1040384
    %v104 = vsel %vm103, %v88, %v102
    %v106 = vlaneseq
    %vm107 = vcmp.ge.s32.totalorder %v106, 0
    %vm108 = vcmp.lt.s32.totalorder %v106, 256
    %vm109 = vmand %vm107, %vm108
    %110 = vst.msk [vmem:[#allocation9] sm:$0x3] %vm109, %v104
    %v113 = vrot.slane %v99, 7
    %v114 = vsel %vm103, %v98, %v113
    %116 = vst.msk [vmem:[#allocation11] sm:$0x3] %vm109, %v114
    %v117 = vrsqrt.pop %v98
    %v118 = vmul.f32 %v117, %v98
    %v119 = vmul.f32 %v118, %v117
    %v120 = vmul.f32 0.5, %v119
    %v121 = vsub.f32 1.5, %v120
    %v122 = vmul.f32 %v117, %v121
    %v123 = vmul.f32 %v98, %v122
    %vm124 = vcmp.eq.f32.partialorder %v98, inf
    %v125 = vsel %vm124, %v98, %v123
    %vm126 = vcmp.eq.f32.partialorder %v98, 0.0
    %v127 = vand.u32 %v98, 2147483648
    %v128 = vsel %vm126, %v127, %v125
    %v129 = vrsqrt.pop %v99
    %v130 = vmul.f32 %v129, %v99
    %v131 = vmul.f32 %v130, %v129
    %v132 = vmul.f32 0.5, %v131
    %v133 = vsub.f32 1.5, %v132
    %v134 = vmul.f32 %v129, %v133
    %v135 = vmul.f32 %v99, %v134
    %vm136 = vcmp.eq.f32.partialorder %v99, inf
    %v137 = vsel %vm136, %v99, %v135
    %vm138 = vcmp.eq.f32.partialorder %v99, 0.0
    %v139 = vand.u32 %v99, 2147483648
    %v140 = vsel %vm138, %v139, %v137
    %v141 = vrsqrt.pop %v98
    %v142 = vmul.f32 %v141, %v98
    %v143 = vmul.f32 %v142, %v141
    %v144 = vmul.f32 0.5, %v143
    %v145 = vsub.f32 1.5, %v144
    %v146 = vmul.f32 %v141, %v145
    %vm147 = vweird.f32 %v98
    %vm148 = vweird.f32 %v141
    %vm149 = vmor %vm147, %vm148
    %v150 = vsel %vm149, %v141, %v146
    %v151 = vrsqrt.pop %v99
    %v152 = vmul.f32 %v151, %v99
    %v153 = vmul.f32 %v152, %v151
    %v154 = vmul.f32 0.5, %v153
    %v155 = vsub.f32 1.5, %v154
    %v156 = vmul.f32 %v151, %v155
    %vm157 = vweird.f32 %v99
    %vm158 = vweird.f32 %v151
    %vm159 = vmor %vm157, %vm158
    %v160 = vsel %vm159, %v151, %v156
    %v161 = vmul.f32 %v128, %v150
    %v162 = vmul.f32 %v140, %v160
    %v163 = vmul.f32 %v88, %v161
    %v164 = vmul.f32 %v89, %v162
    %v165 = vsub.f32 %v88, %v163
    %v166 = vsub.f32 %v89, %v164
    %v167 = vmul.f32 %v60, %v161
    %v168 = vmul.f32 %v61, %v162
    %v169 = vadd.f32 %v167, %v165
    %v170 = vadd.f32 %v168, %v166
    %171 = vst [vmem:[#allocation8] sm:$0xff] %v169
    %172 = vst [vmem:[#allocation8 + $0x8] sm:$0xff] %v170
    // Predicated region
    $region26: #{tpu_custom_call.1} parent=1 // pred_check
      _
    $region27: #{tpu_custom_call.1} parent=1 // pred_check_branch
      %174 = sbr.rel (0) target = $region29
    $region28: #{tpu_custom_call.1} parent=1 // pred_region
      %176 = vsyncadd [#allocation4], 0
      %s178 = sshll.u32 [#allocation8], 4
      %s179 = int_to_ptr.vmem [resolvable:$true] %s178
      %s180 = sshll.u32 %s3, 4
      %s181 = int_to_ptr.hbm [resolvable:$true] %s180
      %183 = dma.vmem_to_hbm [thread:$0]  %s179, 256, %s181, [#allocation4]
    $region29: #{tpu_custom_call.1} parent=1 // pred_fallthru
      _
    // Predicated region
    $region30: #{tpu_custom_call.1} parent=1 // pred_check
      _
    $region31: #{tpu_custom_call.1} parent=1 // pred_check_branch
      %185 = sbr.rel (0) target = $region33
    $region32: #{tpu_custom_call.1} parent=1 // pred_region
      %187 = vsyncadd [#allocation10], 0
      %s189 = sshll.u32 [#allocation9], 4
      %s190 = int_to_ptr.vmem [resolvable:$true] %s189
      %s191 = sshll.u32 %s4, 4
      %s192 = int_to_ptr.hbm [resolvable:$true] %s191
      %194 = dma.vmem_to_hbm [thread:$0]  %s190, 32, %s192, [#allocation10]
    $region33: #{tpu_custom_call.1} parent=1 // pred_fallthru
      _
    // Predicated region
    $region34: #{tpu_custom_call.1} parent=1 // pred_check
      _
    $region35: #{tpu_custom_call.1} parent=1 // pred_check_branch
      %196 = sbr.rel (0) target = $region37
    $region36: #{tpu_custom_call.1} parent=1 // pred_region
      %198 = vsyncadd [#allocation10], 0
      %s200 = sshll.u32 [#allocation11], 4
      %s201 = int_to_ptr.vmem [resolvable:$true] %s200
      %s202 = sshll.u32 %s5, 4
      %s203 = int_to_ptr.hbm [resolvable:$true] %s202
      %205 = dma.vmem_to_hbm [thread:$0]  %s201, 32, %s203, [#allocation10]
    $region37: #{tpu_custom_call.1} parent=1 // pred_fallthru
      _
    // Predicated region
    $region38: #{tpu_custom_call.1} parent=1 // pred_check
      _
    $region39: #{tpu_custom_call.1} parent=1 // pred_check_branch
      %207 = sbr.rel (0) target = $region41
    $region40: #{tpu_custom_call.1} parent=1 // pred_region
      %209 = dma.done [#allocation4], 256
    $region41: #{tpu_custom_call.1} parent=1 // pred_fallthru
      _
    // Predicated region
    $region42: #{tpu_custom_call.1} parent=1 // pred_check
      _
    $region43: #{tpu_custom_call.1} parent=1 // pred_check_branch
      %211 = sbr.rel (0) target = $region45
    $region44: #{tpu_custom_call.1} parent=1 // pred_region
      %213 = dma.done [#allocation10], 32
    $region45: #{tpu_custom_call.1} parent=1 // pred_fallthru
      _
    // Predicated region
    $region46: #{tpu_custom_call.1} parent=1 // pred_check
      _
    $region47: #{tpu_custom_call.1} parent=1 // pred_check_branch
      %215 = sbr.rel (0) target = $region49
    $region48: #{tpu_custom_call.1} parent=1 // pred_region
      %217 = dma.done [#allocation10], 32
    $region49: #{tpu_custom_call.1} parent=1 // pred_fallthru
      _
    %218 = vsyncpa [#allocation3], 1
    %219 = vsyncpa [#allocation6], 1
    %220 = vsyncpa [#allocation4], 1
    %221 = vsyncpa [#allocation10], 1

</llo_original>
